<compile_context>
chip_gen: v7x
topology: tpu7x:2x2x1
jax: 0.10.0
libtpu: 0.0.40
codegen_flags: <defaults>
</compile_context>

<pallas_src>
import jax
import jax.numpy as jnp
from jax.experimental import pallas as pl
from jax.experimental.pallas import tpu as pltpu


def _round_up(x, m):
    return (x + m - 1) // m * m


def residual_add_kernel(x_ref, w_ref, b_ref, o_ref):
    """One (row-tile, col-tile) block of  out = x + (x @ W + b).

    x_ref: (TM, Dp)  full contraction dim
    w_ref: (Dp, TN)  column tile of W (TN == Dp when W is VMEM-resident)
    b_ref: (1,  TN)
    o_ref: (TM, TN)
    """
    tn = o_ref.shape[-1]
    x = x_ref[...]
    # MXU matmul with f32 accumulation (Mosaic's f32 dot matches the f32
    # reference to ~1e-5 at these sizes).
    y = jnp.dot(x, w_ref[...], preferred_element_type=jnp.float32)
    if tn == x_ref.shape[-1]:
        # W resident: residual is the whole x tile.
        x_res = x
    else:
        # W streamed as column tiles: residual is this column slice of x.
        col = pl.multiple_of(pl.program_id(1) * tn, tn)
        x_res = x_ref[:, pl.ds(col, tn)]
    # Single fused VPU combine (residual + bias), one downcast at the store.
    o_ref[...] = (
        y + x_res.astype(jnp.float32) + b_ref[...].astype(jnp.float32)
    ).astype(o_ref.dtype)


def _choose_tiling(M, Dp, x_item, w_item, b_item, budget, max_tm, max_tn):
    """Pick (TM, TN, resident_w) under the VMEM budget."""
    # Keep >= ~4 row-grid steps so double-buffering has work to overlap and the
    # two v7x TensorCores can split the parallel M axis; floor of 8 rows.
    tm_cap = max(8, min(max_tm, _round_up(max((M + 3) // 4, 1), 8)))

    # Path A: whole W resident in VMEM, single-buffered (pl.Buffered(1)).
    fixed_a = Dp * Dp * w_item + Dp * b_item           # W x1, b x1
    per_row_a = 4 * Dp * x_item                        # x + out tiles, 2 bufs each
    tm_a = 0
    if budget > fixed_a:
        tm_a = min(tm_cap, (budget - fixed_a) // per_row_a // 8 * 8)
    if (max_tn is None or max_tn >= Dp or Dp <= 128) and tm_a >= min(tm_cap, 64):
        return int(tm_a), int(Dp), True

    # Path B: stream double-buffered column tiles of W so TM stays large when a
    # resident W would eat the VMEM budget (big D, worst on v7x's 64 MiB core).
    tn = min(Dp, max_tn if max_tn is not None else 512)
    tn = max(128, tn // 128 * 128)
    while Dp % tn != 0:
        tn -= 128
    fixed_b = 2 * Dp * tn * w_item + 2 * tn * b_item
    per_row_b = 2 * (Dp + tn) * x_item
    tm_b = 8
    if budget > fixed_b:
        tm_b = max(8, min(tm_cap, (budget - fixed_b) // per_row_b // 8 * 8))
    return int(tm_b), int(tn), False


def _residual_add_2d(x, w, b, *, max_tm=512, max_tn=None, vmem_budget_bytes=None):
    """out = x + (x @ w + b) for x:(M, D), w:(D, D), b:(1, D)."""
    M, D = x.shape
    assert w.shape == (D, D) and b.shape == (1, D)

    x_item = jnp.dtype(x.dtype).itemsize
    w_item = jnp.dtype(w.dtype).itemsize
    b_item = jnp.dtype(b.dtype).itemsize

    # Feature dim: keep D unpadded when small (full-dim blocks are legal and
    # masked stores beat 4x HBM traffic) or already lane-dense.
    if D <= 64 or D % 128 == 0:
        Dp = D
    else:
        Dp = _round_up(D, 128)
    pad_d = Dp - D

    # VMEM budget from the actual chip (v5e/v6e: 128 MiB, v7x: 64 MiB/core).
    try:
        vmem_cap = int(pltpu.get_tpu_info().vmem_capacity_bytes)
    except Exception:  # conservative fallback = v7x per-core VMEM
        vmem_cap = 64 << 20
    if vmem_budget_bytes is None:
        vmem_budget_bytes = int(0.70 * vmem_cap)
    vmem_budget_bytes = min(int(vmem_budget_bytes), int(0.85 * vmem_cap))

    TM, TN, resident_w = _choose_tiling(
        M, Dp, x_item, w_item, b_item, vmem_budget_bytes, max_tm, max_tn)

    # Only the feature dim is ever padded in HBM; the row axis uses a partial
    # (masked) last block instead of a pad + slice round-trip.
    if pad_d:
        x = jnp.pad(x, ((0, 0), (0, pad_d)))
        w = jnp.pad(w, ((0, pad_d), (0, pad_d)))
        b = jnp.pad(b, ((0, 0), (0, pad_d)))

    grid = (pl.cdiv(M, TM), Dp // TN)

    if resident_w:
        in_specs = [
            pl.BlockSpec((TM, Dp), lambda i, j: (i, 0)),          # x: streamed rows
            pl.BlockSpec((Dp, Dp), lambda i, j: (0, 0),           # W: resident,
                         pipeline_mode=pl.Buffered(1)),           #    single buffer
            pl.BlockSpec((1, Dp), lambda i, j: (0, 0),
                         pipeline_mode=pl.Buffered(1)),
        ]
        vmem_usage = Dp * Dp * w_item + Dp * b_item + 4 * TM * Dp * x_item
    else:
        in_specs = [
            pl.BlockSpec((TM, Dp), lambda i, j: (i, 0)),          # x: streamed rows
            pl.BlockSpec((Dp, TN), lambda i, j: (0, j)),          # W: streamed cols
            pl.BlockSpec((1, TN), lambda i, j: (0, j)),
        ]
        vmem_usage = (2 * Dp * TN * w_item + 2 * TN * b_item
                      + 2 * TM * (Dp + TN) * x_item)

    vmem_limit = int(min(max(vmem_usage + (8 << 20), 32 << 20), int(0.92 * vmem_cap)))
    vmem_limit = max(vmem_limit, vmem_usage + (1 << 20))

    cost = pl.CostEstimate(
        flops=2 * M * Dp * Dp + 2 * M * Dp,
        transcendentals=0,
        bytes_accessed=2 * M * Dp * x_item + Dp * Dp * w_item + Dp * b_item,
    )

    out = pl.pallas_call(
        residual_add_kernel,
        out_shape=jax.ShapeDtypeStruct((M, Dp), x.dtype),
        grid_spec=pltpu.PrefetchScalarGridSpec(
            num_scalar_prefetch=0,
            grid=grid,
            in_specs=in_specs,
            out_specs=pl.BlockSpec((TM, TN), lambda i, j: (i, j)),
        ),
        compiler_params=pltpu.CompilerParams(
            dimension_semantics=("parallel", "parallel"),
            vmem_limit_bytes=vmem_limit,
        ),
        cost_estimate=cost,
    )(x, w, b)

    if pad_d:
        out = out[:, :D]
    return out


def residual_add(x, w, b, **kwargs):
    """ResidualAdd with a Linear block: out = x + (x @ w + b). x: (..., D)."""
    D = x.shape[-1]
    out2d = _residual_add_2d(x.reshape(-1, D), w, b, **kwargs)
    return out2d.reshape(x.shape)


if __name__ == "__main__":
    key = jax.random.PRNGKey(0)
    kx, kw, kb, kx2, kw2, kb2, kx3, kw3, kb3 = jax.random.split(key, 9)

    def ref_fn(x, w, b):
        y = jnp.einsum("...d,de->...e", x, w, precision=jax.lax.Precision.HIGHEST)
        return x + (y + b[0])

    # Check 1: ECGformer-style small shapes (batch, seq, hidden) = (2, 8, 32);
    # D < 64 -> unpadded feature dim, 2-step row grid, resident W.
    batch, seq, hidden = 2, 8, 32
    x = jax.random.normal(kx, (batch, seq, hidden), dtype=jnp.float32)
    w = jax.random.normal(kw, (hidden, hidden), dtype=jnp.float32) / jnp.sqrt(hidden)
    b = jax.random.normal(kb, (1, hidden), dtype=jnp.float32) * 0.01
    out = residual_add(x, w, b)
    jax.block_until_ready(out)
    assert jnp.allclose(out, ref_fn(x, w, b), atol=2e-4, rtol=2e-4), "mismatch (D=32)"

    # Check 2: lane-dense hidden=128 with M=130 rows -> multi-step row grid with
    # a masked partial last row block (no HBM-side row padding).
    x2 = jax.random.normal(kx2, (2, 65, 128), dtype=jnp.float32)
    w2 = jax.random.normal(kw2, (128, 128), dtype=jnp.float32) / jnp.sqrt(128.0)
    b2 = jax.random.normal(kb2, (1, 128), dtype=jnp.float32) * 0.01
    out2 = residual_add(x2, w2, b2)
    jax.block_until_ready(out2)
    assert jnp.allclose(out2, ref_fn(x2, w2, b2), atol=2e-4, rtol=2e-4), "mismatch (D=128)"

    # Check 3: force the W-column-streaming path (2-D grid + in-kernel residual
    # column slice) with hidden=256 and a 128-wide column tile.
    x3 = jax.random.normal(kx3, (2, 64, 256), dtype=jnp.float32)
    w3 = jax.random.normal(kw3, (256, 256), dtype=jnp.float32) / jnp.sqrt(256.0)
    b3 = jax.random.normal(kb3, (1, 256), dtype=jnp.float32) * 0.01
    out3 = residual_add(x3, w3, b3, max_tn=128)
    jax.block_until_ready(out3)
    assert jnp.allclose(out3, ref_fn(x3, w3, b3), atol=2e-4, rtol=2e-4), "mismatch (D=256)"

    print("KERNEL_OK")
</pallas_src>

<mosaic_0001>
module attributes {stable_mosaic.version = 11 : i64} {
  func.func @residual_add_kernel(%arg0: i32, %arg1: i32, %arg2: memref<8x32xf32, #tpu.memory_space<vmem>>, %arg3: memref<32x32xf32, #tpu.memory_space<vmem>>, %arg4: memref<1x32xf32, #tpu.memory_space<vmem>>, %arg5: memref<8x32xf32, #tpu.memory_space<vmem>>) attributes {dimension_semantics = [#tpu.dimension_semantics<parallel>, #tpu.dimension_semantics<parallel>], iteration_bounds = array<i64: 2, 1>, scalar_prefetch = 0 : i64, scratch_operands = 0 : i64, tpu.core_type = #tpu.core_type<tc>, window_params = [{transform_indices = @transform_0, window_bounds = array<i64: 8, 32>}, {pipeline_mode = #tpu.pipeline_mode<synchronous>, transform_indices = @transform_1, window_bounds = array<i64: 32, 32>}, {pipeline_mode = #tpu.pipeline_mode<synchronous>, transform_indices = @transform_2, window_bounds = array<i64: 1, 32>}, {transform_indices = @transform_3, window_bounds = array<i64: 8, 32>}]} {
    %c0 = arith.constant 0 : index
    %c0_0 = arith.constant 0 : index
    %0 = vector.load %arg2[%c0, %c0_0] : memref<8x32xf32, #tpu.memory_space<vmem>>, vector<8x32xf32>
    %c0_1 = arith.constant 0 : index
    %c0_2 = arith.constant 0 : index
    %1 = vector.load %arg3[%c0_1, %c0_2] : memref<32x32xf32, #tpu.memory_space<vmem>>, vector<32x32xf32>
    %cst = arith.constant dense<0.000000e+00> : vector<8x32xf32>
    %2 = tpu.matmul %0, %1, %cst {dimension_numbers = #tpu.dot_dimension_numbers<[1], [0], [0], [1], [0, 0, 1, 1], [], []>} : vector<8x32xf32>, vector<32x32xf32>, vector<8x32xf32> -> vector<8x32xf32>
    %3 = arith.addf %2, %0 : vector<8x32xf32>
    %c0_3 = arith.constant 0 : index
    %c0_4 = arith.constant 0 : index
    %4 = vector.load %arg4[%c0_3, %c0_4] : memref<1x32xf32, #tpu.memory_space<vmem>>, vector<1x32xf32>
    %5 = vector.broadcast %4 : vector<1x32xf32> to vector<8x32xf32>
    %6 = arith.addf %3, %5 : vector<8x32xf32>
    %c0_5 = arith.constant 0 : index
    %c0_6 = arith.constant 0 : index
    %7 = vector.load %arg5[%c0_5, %c0_6] : memref<8x32xf32, #tpu.memory_space<vmem>>, vector<8x32xf32>
    tpu.vector_store %arg5[%c0_5, %c0_6], %6 {strides = array<i32>} : memref<8x32xf32, #tpu.memory_space<vmem>>, vector<8x32xf32>,
    return
  }
  func.func @transform_0(%arg0: i32, %arg1: i32) -> (i32, i32) {
    %c0_i32 = arith.constant 0 : i32
    %c0_i32_0 = arith.constant 0 : i32
    return %arg0, %c0_i32 : i32, i32
  }
  func.func @transform_1(%arg0: i32, %arg1: i32) -> (i32, i32) {
    %c0_i32 = arith.constant 0 : i32
    %c0_i32_0 = arith.constant 0 : i32
    %c0_i32_1 = arith.constant 0 : i32
    return %c0_i32, %c0_i32_0 : i32, i32
  }
  func.func @transform_2(%arg0: i32, %arg1: i32) -> (i32, i32) {
    %c0_i32 = arith.constant 0 : i32
    %c0_i32_0 = arith.constant 0 : i32
    %c0_i32_1 = arith.constant 0 : i32
    return %c0_i32, %c0_i32_0 : i32, i32
  }
  func.func @transform_3(%arg0: i32, %arg1: i32) -> (i32, i32) {
    %c0_i32 = arith.constant 0 : i32
    return %arg0, %arg1 : i32, i32
  }
}

</mosaic_0001>

<llo_original>
// kernel: tpu_custom_call.1
$region0: #{tpu_custom_call.1}
  #allocation0 [shape = 'u32[]', space=smem, size = 0x4, offset = 0x4, fixed_abs, tag = 'smem constant byte address 0x4 - core index']
  #allocation1 [shape = 'u32[144,128]{1,0:T(1,128)}', space=vmem, size = 0x12000, scoped, tag = 'internal scratch']
  %s0 = inlined_call_operand.hbm [shape: f32[16,32], index: 0, kind: input, shape index: {}]
  %s1 = inlined_call_operand.hbm [shape: f32[32,32], index: 1, kind: input, shape index: {}]
  %s2 = inlined_call_operand.vmem [shape: f32[1,32], index: 2, kind: input, shape index: {}]
  %s3 = inlined_call_operand.hbm [shape: f32[16,32], index: 3, kind: output, shape index: {}]
  %s4 = sld [smem:[#allocation0]]
  $region53: #{tpu_custom_call.1} parent=0
    _
  %s6 = ssub.s32 1, %s4
  %s7 = scalar_select 0, %s6, %s4
  $region1: #{tpu_custom_call.1} parent=0
    #allocation2 [shape = 'u8[8192]{0}', space=vmem, size = 0x2000, scoped, tag = 'input window, operand 0']
    #allocation3 [shape = 's32[2]{0}', space=sflag, size = 0x8, scoped, tag = 'scoped memory for tpu_custom_call.1']
    #allocation4 [shape = 's32[2]{0}', space=sflag, size = 0x8, scoped, tag = 'scoped memory for tpu_custom_call.1']
    #allocation5 [shape = 'u8[16384]{0}', space=vmem, size = 0x4000, scoped, tag = 'input window, operand 1, single buffered']
    #allocation6 [shape = 's32[1]{0}', space=sflag, size = 0x4, scoped, tag = 'scoped memory for tpu_custom_call.1']
    #allocation7 [shape = 'u8[8192]{0}', space=vmem, size = 0x2000, scoped, tag = 'output window, operand 0']
    %8 = vsyncpa [#allocation3], 0
    %s9 = scalar_lea.sflag [#allocation3], 1
    %10 = vsyncpa %s9, 0
    %11 = vsyncpa [#allocation6], 0
    %12 = vsyncpa [#allocation4], 0
    %s13 = scalar_lea.sflag [#allocation4], 1
    %14 = vsyncpa %s13, 0
    loop: start=0, step=1, limit=4
    $region2: #{tpu_custom_call.1} parent=1 // loop_pre_header
      _
    $region3: #{tpu_custom_call.1} parent=1 // loop_header
      %s16 = sphi 0, %s20
      %p17 = scmp.ge.s32.totalorder %s16, 4
      %s23 = sphi 0, %s35
      %s24 = sphi 0, %s31
      %s25 = sphi 0, %s23
      %s26 = sphi 0, %s24
      %s27 = sphi 0, %s25
      %s28 = sphi 0, %s26
      %s38 = sphi 0, %s40
      %s41 = sphi 0, %s38
      %s42 = sphi 0, %s41
      %s58 = sphi 0, %s42
      %s62 = sphi 0, %s62
      %s64 = sphi 0, %s62
      %s65 = sphi 0, %s64
      %s79 = sphi 0, %s65
      %s83 = sphi 0, %s83
      %s85 = sphi 0, %s83
      %s86 = sphi 0, %s85
      %s100 = sphi 0, %s86
      %s108 = sphi 0, %s110
      %s111 = sphi 0, %s108
      %s112 = sphi 0, %s111
      %s128 = sphi 0, %s112
    $region4: #{tpu_custom_call.1} parent=1 // loop_header_branch
      %19 = sbr.rel (%p17) target = $region8
    $region5: #{tpu_custom_call.1} parent=1 // loop_body
      %s21 = ssub.s32 %s16, 1
      %s22 = ssub.s32 %s16, 2
      %s29 = sadd.s32 1, %s24
      %p30 = scmp.ge.s32.totalorder %s29, 1
      %s31 = scalar_select %p30, 0, %s29
      %s32 = sadd.s32 1, %s23
      %s33 = scalar_select %p30, %s32, %s23
      %p34 = scmp.ge.s32.totalorder %s33, 2
      %s35 = scalar_select %p34, 0, %s33
      %s36 = ssub.s32 %s23, %s35
      %p37 = scmp.eq.s32.totalorder %s36, 0
      %s39 = sadd.s32 %s38, 1
      %s40 = scalar_select %p37, %s38, %s39
      %p43 = pneg %p37
      %p44 = scmp.eq.s32.totalorder %s16, 1
      %p45 = por %p43, %p44
      %p46 = scmp.ne.s32.totalorder %s38, %s41
      %p47 = scmp.eq.s32.totalorder %s16, 0
      %p48 = por %p46, %p47
      %p49 = scmp.ne.s32.totalorder %s38, %s41
      %p50 = scmp.eq.s32.totalorder %s21, 1
      %p51 = por %p49, %p50
      %p52 = scmp.ne.s32.totalorder %s41, %s42
      %p53 = scmp.eq.s32.totalorder %s21, 0
      %p54 = por %p52, %p53
      %p55 = scmp.ne.s32.totalorder %s41, %s42
      %p56 = scmp.eq.s32.totalorder %s22, 1
      %p57 = por %p55, %p56
      %p59 = scmp.ne.s32.totalorder %s42, %s58
      %p60 = scmp.eq.s32.totalorder %s22, 0
      %p61 = por %p59, %p60
      %s63 = sadd.s32 %s62, 1
      %p66 = scmp.eq.s32.totalorder %s16, 1
      %p67 = scmp.ne.s32.totalorder %s62, %s64
      %p68 = scmp.eq.s32.totalorder %s16, 0
      %p69 = por %p67, %p68
      %p70 = scmp.ne.s32.totalorder %s62, %s64
      %p71 = scmp.eq.s32.totalorder %s21, 1
      %p72 = por %p70, %p71
      %p73 = scmp.ne.s32.totalorder %s64, %s65
      %p74 = scmp.eq.s32.totalorder %s21, 0
      %p75 = por %p73, %p74
      %p76 = scmp.ne.s32.totalorder %s64, %s65
      %p77 = scmp.eq.s32.totalorder %s22, 1
      %p78 = por %p76, %p77
      %p80 = scmp.ne.s32.totalorder %s65, %s79
      %p81 = scmp.eq.s32.totalorder %s22, 0
      %p82 = por %p80, %p81
      %s84 = sadd.s32 %s83, 1
      %p87 = scmp.eq.s32.totalorder %s16, 1
      %p88 = scmp.ne.s32.totalorder %s83, %s85
      %p89 = scmp.eq.s32.totalorder %s16, 0
      %p90 = por %p88, %p89
      %p91 = scmp.ne.s32.totalorder %s83, %s85
      %p92 = scmp.eq.s32.totalorder %s21, 1
      %p93 = por %p91, %p92
      %p94 = scmp.ne.s32.totalorder %s85, %s86
      %p95 = scmp.eq.s32.totalorder %s21, 0
      %p96 = por %p94, %p95
      %p97 = scmp.ne.s32.totalorder %s85, %s86
      %p98 = scmp.eq.s32.totalorder %s22, 1
      %p99 = por %p97, %p98
      %p101 = scmp.ne.s32.totalorder %s86, %s100
      %p102 = scmp.eq.s32.totalorder %s22, 0
      %p103 = por %p101, %p102
      %s104 = ssub.s32 %s23, %s35
      %s105 = ssub.s32 %s24, %s31
      %s106 = sor.u32 %s104, %s105
      %p107 = scmp.eq.s32.totalorder %s106, 0
      %s109 = sadd.s32 %s108, 1
      %s110 = scalar_select %p107, %s108, %s109
      %p113 = pneg %p107
      %p114 = scmp.eq.s32.totalorder %s16, 1
      %p115 = por %p113, %p114
      %p116 = scmp.ne.s32.totalorder %s108, %s111
      %p117 = scmp.eq.s32.totalorder %s16, 0
      %p118 = por %p116, %p117
      %p119 = scmp.ne.s32.totalorder %s108, %s111
      %p120 = scmp.eq.s32.totalorder %s21, 1
      %p121 = por %p119, %p120
      %p122 = scmp.ne.s32.totalorder %s111, %s112
      %p123 = scmp.eq.s32.totalorder %s21, 0
      %p124 = por %p122, %p123
      %p125 = scmp.ne.s32.totalorder %s111, %s112
      %p126 = scmp.eq.s32.totalorder %s22, 1
      %p127 = por %p125, %p126
      %p129 = scmp.ne.s32.totalorder %s112, %s128
      %p130 = scmp.eq.s32.totalorder %s22, 0
      %p131 = por %p129, %p130
      %p132 = scmp.le.s32.totalorder 1, %s16
      %p133 = scmp.lt.s32.totalorder %s16, 3
      %p134 = pnand %p132, %p133
      %p135 = pneg %p134
      // Predicated region
      $region9: #{tpu_custom_call.1} parent=5 // pred_check
        _
      $region10: #{tpu_custom_call.1} parent=5 // pred_check_branch
        %137 = sbr.rel (%p134) target = $region12
      $region11: #{tpu_custom_call.1} parent=5 // pred_region
        %s138 = ssub.s32 %s16, 1
        // Predicated region
        $region13: #{tpu_custom_call.1} parent=11 // pred_check
          %p139 = pneg %p75
        $region14: #{tpu_custom_call.1} parent=11 // pred_check_branch
          %141 = sbr.rel (%p139) target = $region16
        $region15: #{tpu_custom_call.1} parent=11 // pred_region
          %s143 = ssub.s32 512, 512
          %144 = vsyncadd [#allocation6], %s143
          %s145 = sshll.u32 [#allocation5], 4
          %s146 = int_to_ptr.vmem [resolvable:$true] %s145
          %151 = dma.hbm_to_vmem [thread:$0]  %s1, 512, %s146, [#allocation6], 128, 128, 8
        $region16: #{tpu_custom_call.1} parent=11 // pred_fallthru
          _
        // Predicated region
        $region17: #{tpu_custom_call.1} parent=11 // pred_check
          %p152 = pneg %p96
        $region18: #{tpu_custom_call.1} parent=11 // pred_check_branch
          %154 = sbr.rel (%p152) target = $region20
        $region19: #{tpu_custom_call.1} parent=11 // pred_region
          _
        $region20: #{tpu_custom_call.1} parent=11 // pred_fallthru
          _
      $region12: #{tpu_custom_call.1} parent=5 // pred_fallthru
        _
      %p155 = scmp.lt.s32.totalorder %s16, 2
      // Predicated region
      $region21: #{tpu_custom_call.1} parent=5 // pred_check
        %p156 = pneg %p155
      $region22: #{tpu_custom_call.1} parent=5 // pred_check_branch
        %158 = sbr.rel (%p156) target = $region24
      $region23: #{tpu_custom_call.1} parent=5 // pred_region
        // Predicated region
        $region25: #{tpu_custom_call.1} parent=23 // pred_check
          %p159 = pneg %p48
        $region26: #{tpu_custom_call.1} parent=23 // pred_check_branch
          %161 = sbr.rel (%p159) target = $region28
        $region27: #{tpu_custom_call.1} parent=23 // pred_region
          %s162 = sand.u32 %s38, 1
          %s163 = scalar_lea.sflag [#allocation3], %s162
          %s164 = sand.u32 %s38, 1
          %s165 = smul.addr %s164, 8
          %s166 = scalar_lea.vmem [#allocation2], %s165
          %s168 = ssub.s32 128, 128
          %169 = vsyncadd %s163, %s168
          %s170 = smul.addr %s23, 128
          %s171 = scalar_lea.hbm %s0, %s170
          %s173 = sshll.u32 %s166, 4
          %s174 = int_to_ptr.vmem [resolvable:$true] %s173
          %176 = dma.hbm_to_vmem [thread:$0]  %s171, 128, %s174, %s163
        $region28: #{tpu_custom_call.1} parent=23 // pred_fallthru
          _
      $region24: #{tpu_custom_call.1} parent=5 // pred_fallthru
        _
      %p177 = scmp.le.s32.totalorder 1, %s16
      %p178 = scmp.lt.s32.totalorder %s16, 3
      %p179 = pnand %p177, %p178
      %p180 = pneg %p179
      // Predicated region
      $region29: #{tpu_custom_call.1} parent=5 // pred_check
        _
      $region30: #{tpu_custom_call.1} parent=5 // pred_check_branch
        %182 = sbr.rel (%p179) target = $region32
      $region31: #{tpu_custom_call.1} parent=5 // pred_region
        %s183 = ssub.s32 %s16, 1
        %s184 = sand.u32 %s41, 1
        %s185 = scalar_lea.sflag [#allocation3], %s184
        %s186 = sand.u32 %s41, 1
        %s187 = smul.addr %s186, 8
        %s188 = scalar_lea.vmem [#allocation2], %s187
        // Predicated region
        $region33: #{tpu_custom_call.1} parent=31 // pred_check
          %p189 = pneg %p54
        $region34: #{tpu_custom_call.1} parent=31 // pred_check_branch
          %191 = sbr.rel (%p189) target = $region36
        $region35: #{tpu_custom_call.1} parent=31 // pred_region
          %192 = dma.done %s185, 128
        $region36: #{tpu_custom_call.1} parent=31 // pred_fallthru
          _
        // Predicated region
        $region37: #{tpu_custom_call.1} parent=31 // pred_check
          %p193 = pneg %p75
        $region38: #{tpu_custom_call.1} parent=31 // pred_check_branch
          %195 = sbr.rel (%p193) target = $region40
        $region39: #{tpu_custom_call.1} parent=31 // pred_region
          %196 = dma.done [#allocation6], 512
        $region40: #{tpu_custom_call.1} parent=31 // pred_fallthru
          _
        %s197 = sand.u32 %s41, 1
        %s198 = scalar_lea.sflag [#allocation3], %s197
        %s199 = sand.u32 %s41, 1
        %s200 = smul.addr %s199, 8
        %s201 = scalar_lea.vmem [#allocation2], %s200
        %p202 = pneg %p54
        %p203 = pneg %p51
        %p204 = pneg %p75
        %p205 = pneg %p72
        %p206 = pneg %p96
        %p207 = pneg %p93
        %p208 = pneg %p124
        %p209 = pneg %p121
        %s210 = sand.u32 %s111, 1
        %s211 = scalar_lea.sflag [#allocation4], %s210
        %s212 = sand.u32 %s111, 1
        %s213 = smul.addr %s212, 8
        %s214 = scalar_lea.vmem [#allocation7], %s213
        %v215 = vld [vmem:[%s188] sm:$0xff]
        %v216 = vld [vmem:[#allocation5] sm:$0xff]
        %v217 = vld [vmem:[#allocation5 + $0x8] sm:$0xff]
        %v218 = vld [vmem:[#allocation5 + $0x10] sm:$0xff]
        %v219 = vld [vmem:[#allocation5 + $0x18] sm:$0xff]
        %vm220 = vcmask 261120
        %v222 = vsel %vm220, %v215, 0
        %224 = vmatprep.subr.mxu0 0.0
        %225 = vmatpush1.msra.mxu0 %v216
        %226 = vmatprep.subr.mxu0 0.0
        %227 = vmatpush1.msra.mxu0 %v217
        %228 = vmatprep.subr.mxu0 0.0
        %229 = vmatpush1.msra.mxu0 %v218
        %230 = vmatprep.subr.mxu0 0.0
        %231 = vmatpush1.msra.mxu0 %v219
        %232 = vmatprep.subr.mxu0 0.0
        %233 = vmatpush1.msra.mxu0 0.0
        %234 = vmatprep.subr.mxu0 0.0
        %235 = vmatpush1.msra.mxu0 0.0
        %236 = vmatprep.subr.mxu0 0.0
        %237 = vmatpush1.msra.mxu0 0.0
        %238 = vmatprep.subr.mxu0 0.0
        %239 = vmatpush1.msra.mxu0 0.0
        %240 = vmatprep.subr.mxu0 0.0
        %241 = vmatpush1.msra.mxu0 0.0
        %242 = vmatprep.subr.mxu0 0.0
        %243 = vmatpush1.msra.mxu0 0.0
        %244 = vmatprep.subr.mxu0 0.0
        %245 = vmatpush1.msra.mxu0 0.0
        %246 = vmatprep.subr.mxu0 0.0
        %247 = vmatpush1.msra.mxu0 0.0
        %248 = vmatprep.subr.mxu0 0.0
        %249 = vmatpush1.msra.mxu0 0.0
        %250 = vmatprep.subr.mxu0 0.0
        %251 = vmatpush1.msra.mxu0 0.0
        %252 = vmatprep.subr.mxu0 0.0
        %253 = vmatpush1.msra.mxu0 0.0
        %254 = vmatprep.subr.mxu0 0.0
        %255 = vmatpush1.msra.mxu0 0.0
        %256 = vmatprep.subr.mxu0 0.0
        %257 = vmatpush1.msra.mxu0 0.0
        %258 = vmatprep.subr.mxu0 0.0
        %259 = vmatpush1.msra.mxu0 0.0
        %260 = vmatprep.subr.mxu0 0.0
        %261 = vmatpush1.msra.mxu0 0.0
        %262 = vmatprep.subr.mxu0 0.0
        %263 = vmatpush1.msra.mxu0 0.0
        %264 = vmatprep.subr.mxu0 0.0
        %265 = vmatpush1.msra.mxu0 0.0
        %266 = vmatprep.subr.mxu0 0.0
        %267 = vmatpush1.msra.mxu0 0.0
        %268 = vmatprep.subr.mxu0 0.0
        %269 = vmatpush1.msra.mxu0 0.0
        %270 = vmatprep.subr.mxu0 0.0
        %271 = vmatpush1.msra.mxu0 0.0
        %272 = vmatprep.subr.mxu0 0.0
        %273 = vmatpush1.msra.mxu0 0.0
        %274 = vmatprep.subr.mxu0 0.0
        %275 = vmatpush1.msra.mxu0 0.0
        %276 = vmatprep.subr.mxu0 0.0
        %277 = vmatpush1.msra.mxu0 0.0
        %278 = vmatprep.subr.mxu0 0.0
        %279 = vmatpush1.msra.mxu0 0.0
        %280 = vmatprep.subr.mxu0 0.0
        %281 = vmatpush1.msra.mxu0 0.0
        %282 = vmatprep.subr.mxu0 0.0
        %283 = vmatpush1.msra.mxu0 0.0
        %284 = vmatprep.subr.mxu0 0.0
        %285 = vmatpush1.msra.mxu0 0.0
        %286 = vmatprep.subr.mxu0 0.0
        %287 = vmatpush1.msra.mxu0 0.0
        %288 = vmatprep.mubr.f32.mxu0 0.0
        %289 = vmatmul.mubr.f32.gmra.mrb[0].mxu0 %v222
        %v290 = vpop.f32.mrb[0].mxu0
        %v291 = vadd.f32 %v215, %v290
        %v292 = vpop.f32.mrb[0].mxu0
        %293 = vdwg.mxu0
        %v294 = vld [vmem:[%s2] sm:$0x1]
        %v296 = vlaneseq
        %v297 = vshrl.u32 %v296, 7
        %v298 = vsub.s32 0, %v297
        %v299 = vrot.slane %v294, %v298
        %v301 = vadd.f32 %v291, %v299
        %302 = vst.msk [vmem:[%s214] sm:$0xff] %vm220, %v301
        %s303 = sand.u32 %s111, 1
        %s304 = scalar_lea.sflag [#allocation4], %s303
        %s305 = sand.u32 %s111, 1
        %s306 = smul.addr %s305, 8
        %s307 = scalar_lea.vmem [#allocation7], %s306
        // Predicated region
        $region41: #{tpu_custom_call.1} parent=31 // pred_check
          %p308 = pneg %p121
        $region42: #{tpu_custom_call.1} parent=31 // pred_check_branch
          %310 = sbr.rel (%p308) target = $region44
        $region43: #{tpu_custom_call.1} parent=31 // pred_region
          %s312 = ssub.s32 128, 128
          %313 = vsyncadd %s304, %s312
          %s314 = sadd.s32 %s26, %s25
          %s315 = smul.addr %s314, 128
          %s316 = scalar_lea.hbm %s3, %s315
          %s318 = sshll.u32 %s307, 4
          %s319 = int_to_ptr.vmem [resolvable:$true] %s318
          %321 = dma.vmem_to_hbm [thread:$0]  %s319, 128, %s316, %s304
        $region44: #{tpu_custom_call.1} parent=31 // pred_fallthru
          _
      $region32: #{tpu_custom_call.1} parent=5 // pred_fallthru
        _
      %p322 = scmp.le.s32.totalorder 2, %s16
      // Predicated region
      $region45: #{tpu_custom_call.1} parent=5 // pred_check
        %p323 = pneg %p322
      $region46: #{tpu_custom_call.1} parent=5 // pred_check_branch
        %325 = sbr.rel (%p323) target = $region48
      $region47: #{tpu_custom_call.1} parent=5 // pred_region
        %s326 = ssub.s32 %s16, 2
        // Predicated region
        $region49: #{tpu_custom_call.1} parent=47 // pred_check
          %p327 = pneg %p127
        $region50: #{tpu_custom_call.1} parent=47 // pred_check_branch
          %329 = sbr.rel (%p327) target = $region52
        $region51: #{tpu_custom_call.1} parent=47 // pred_region
          %s330 = sand.u32 %s112, 1
          %s331 = scalar_lea.sflag [#allocation4], %s330
          %s332 = sand.u32 %s112, 1
          %s333 = smul.addr %s332, 8
          %s334 = scalar_lea.vmem [#allocation7], %s333
          %335 = dma.done %s331, 128
        $region52: #{tpu_custom_call.1} parent=47 // pred_fallthru
          _
      $region48: #{tpu_custom_call.1} parent=5 // pred_fallthru
        _
    $region6: #{tpu_custom_call.1} parent=1 // loop_footer
      %s20 = sadd.s32 1, %s16
    $region7: #{tpu_custom_call.1} parent=1 // loop_footer_branch
      %15 = sbr.rel target = $region3
    $region8: #{tpu_custom_call.1} parent=1 // loop_exit
      _
    %336 = vsyncpa [#allocation3], 1
    %s337 = scalar_lea.sflag [#allocation3], 1
    %338 = vsyncpa %s337, 1
    %339 = vsyncpa [#allocation6], 1
    %340 = vsyncpa [#allocation4], 1
    %s341 = scalar_lea.sflag [#allocation4], 1
    %342 = vsyncpa %s341, 1

</llo_original>
